<compile_context>
chip_gen: v5e
topology: v5e:2x2
jax: 0.10.0
libtpu: 0.0.40
codegen_flags: <defaults>
</compile_context>

<pallas_src>
import functools

import jax
import jax.numpy as jnp
from jax import lax
from jax.experimental import pallas as pl
from jax.experimental.pallas import tpu as pltpu


def _round_up(x, m):
    return (x + m - 1) // m * m


# ----------------------------------------------------------------------------
# Pallas kernels: matmul with fused (+shift, ReLU) epilogue
# ----------------------------------------------------------------------------
def _mm_shift_relu_kernel(a_ref, b_ref, shift_ref, o_ref):
    # Full-K block: one MXU matmul per (i, j) tile, f32 accumulation, fused epilogue.
    acc = jnp.dot(a_ref[...], b_ref[...], preferred_element_type=jnp.float32)
    o_ref[...] = jnp.maximum(acc + shift_ref[...], 0.0).astype(o_ref.dtype)


def _mm_shift_relu_acc_kernel(a_ref, b_ref, shift_ref, o_ref, acc_ref):
    # Fallback for very large K: standard accumulator over the last grid axis.
    @pl.when(pl.program_id(2) == 0)
    def _():
        acc_ref[...] = jnp.zeros_like(acc_ref)

    acc_ref[...] += jnp.dot(a_ref[...], b_ref[...],
                            preferred_element_type=jnp.float32)

    @pl.when(pl.program_id(2) == pl.num_programs(2) - 1)
    def _():
        o_ref[...] = jnp.maximum(acc_ref[...] + shift_ref[...], 0.0).astype(o_ref.dtype)


def matmul_shift_relu(a, b, shift, *, out_dtype=jnp.float32,
                      tm_max=512, tn_max=512, tk=128,
                      vmem_budget_bytes=24 * 1024 * 1024):
    """relu(a @ b + shift); shift broadcast per output column.

    a: (M, K), b: (K, Nc), shift: (Nc,).  Operands are cast to bf16 (MXU-native),
    the matmul accumulates in f32, the epilogue adds the folded BN shift and ReLU.
    """
    M, K = a.shape
    K2, Nc = b.shape
    assert K == K2 and shift.shape == (Nc,)

    a = a.astype(jnp.bfloat16)
    b = b.astype(jnp.bfloat16)
    shift = shift.astype(jnp.float32).reshape(1, Nc)

    # bf16 packs along sublanes -> keep tm and the K padding multiples of 16;
    # lane dim (tn) multiples of 128.  Don't blow tiles past the problem size.
    tm = min(tm_max, _round_up(M, 16))
    tn = min(tn_max, _round_up(Nc, 128))
    Mp = _round_up(M, tm)
    Np = _round_up(Nc, tn)
    Kp = _round_up(K, 16)

    if Mp != M or Kp != K:
        a = jnp.pad(a, ((0, Mp - M), (0, Kp - K)))
    if Kp != K or Np != Nc:
        b = jnp.pad(b, ((0, Kp - K), (0, Np - Nc)))
    if Np != Nc:
        shift = jnp.pad(shift, ((0, 0), (0, Np - Nc)))

    itemsize_out = jnp.dtype(out_dtype).itemsize
    # Rough double-buffered working set for a full-K block.
    full_k_bytes = 2 * (tm * Kp * 2 + Kp * tn * 2 + tm * tn * itemsize_out)

    if full_k_bytes <= vmem_budget_bytes:
        # Whole K in one block: no reduction axis, no scratch, fully parallel grid.
        out = pl.pallas_call(
            _mm_shift_relu_kernel,
            out_shape=jax.ShapeDtypeStruct((Mp, Np), out_dtype),
            grid_spec=pltpu.PrefetchScalarGridSpec(
                num_scalar_prefetch=0,
                grid=(Mp // tm, Np // tn),
                in_specs=[
                    pl.BlockSpec((tm, Kp), lambda i, j: (i, 0)),
                    pl.BlockSpec((Kp, tn), lambda i, j: (0, j)),
                    pl.BlockSpec((1, tn), lambda i, j: (0, j)),
                ],
                out_specs=pl.BlockSpec((tm, tn), lambda i, j: (i, j)),
            ),
            compiler_params=pltpu.CompilerParams(
                dimension_semantics=("parallel", "parallel")),
        )(a, b, shift)
    else:
        # K-tiled accumulator fallback (reduction axis last, "arbitrary").
        Kp2 = _round_up(Kp, tk)
        if Kp2 != Kp:
            a = jnp.pad(a, ((0, 0), (0, Kp2 - Kp)))
            b = jnp.pad(b, ((0, Kp2 - Kp), (0, 0)))
        out = pl.pallas_call(
            _mm_shift_relu_acc_kernel,
            out_shape=jax.ShapeDtypeStruct((Mp, Np), out_dtype),
            grid_spec=pltpu.PrefetchScalarGridSpec(
                num_scalar_prefetch=0,
                grid=(Mp // tm, Np // tn, Kp2 // tk),
                in_specs=[
                    pl.BlockSpec((tm, tk), lambda i, j, kk: (i, kk)),
                    pl.BlockSpec((tk, tn), lambda i, j, kk: (kk, j)),
                    pl.BlockSpec((1, tn), lambda i, j, kk: (0, j)),
                ],
                out_specs=pl.BlockSpec((tm, tn), lambda i, j, kk: (i, j)),
                scratch_shapes=[pltpu.VMEM((tm, tn), jnp.float32)],
            ),
            compiler_params=pltpu.CompilerParams(
                dimension_semantics=("parallel", "parallel", "arbitrary")),
        )(a, b, shift)

    if Mp != M or Np != Nc:
        out = out[:M, :Nc]
    return out


# ----------------------------------------------------------------------------
# Glue: im2col / BN folding / sub-pixel transposed conv (shapes only in JAX;
#       all FLOPs run inside the Pallas matmuls above)
# ----------------------------------------------------------------------------
def _im2col_3d(x, k, pads):
    """x: (N, D, H, W, C); pads: ((dlo,dhi),(hlo,hhi),(wlo,whi)); stride-1, kxkxk."""
    xp = jnp.pad(x, ((0, 0), pads[0], pads[1], pads[2], (0, 0)))
    N, Dp, Hp, Wp, C = xp.shape
    Do, Ho, Wo = Dp - k + 1, Hp - k + 1, Wp - k + 1
    cols = []
    for kd in range(k):
        for kh in range(k):
            for kw in range(k):
                cols.append(xp[:, kd:kd + Do, kh:kh + Ho, kw:kw + Wo, :])
    patches = jnp.concatenate(cols, axis=-1)              # (N,Do,Ho,Wo, k^3*C)
    return patches.reshape(N * Do * Ho * Wo, k * k * k * C), (N, Do, Ho, Wo)


def _bn_fold(bias, gamma, beta, mean, var, eps=1e-5):
    """Fold conv bias + inference BN into per-channel (scale, shift)."""
    inv = gamma / jnp.sqrt(var + eps)
    return inv, (bias - mean) * inv + beta


def _conv_transpose3d_phases(y, w, scale, shift, stride, padding, output_padding,
                             *, out_dtype=jnp.float32):
    """ConvTranspose3d(k=3) + folded-BN + ReLU via sub-pixel phase decomposition.

    y: (N, D, H, W, Cin) channels-last (bf16 ok); w: (Cin, Cout, kd, kh, kw)
    (PyTorch ConvTranspose3d layout); scale/shift: (Cout,) folded BN params.
    Each output phase (od%s, oh%s, ow%s) only receives the taps kk with
    (phase + padding - kk) % stride == 0, so every phase is a small dense
    stride-1 conv over y itself (no zero-dilated intermediate), lowered to one
    fused Pallas matmul and scattered back with a strided set.
    """
    N, D, H, W, Cin = y.shape
    Cout = w.shape[1]
    k = w.shape[2]
    s, p, op = stride, padding, output_padding
    in_sz = (D, H, W)
    out_sz = tuple((in_sz[d] - 1) * s[d] - 2 * p[d] + k + op[d] for d in range(3))

    # Static per-dim tap table: taps[d][r] = [(kk, off)] with input index = q + off.
    taps, counts = [], []
    for d in range(3):
        taps_d, counts_d = [], []
        for r in range(s[d]):
            lst = [(kk, (r + p[d] - kk) // s[d])
                   for kk in range(k) if (r + p[d] - kk) % s[d] == 0]
            taps_d.append(lst)
            q = (out_sz[d] - r + s[d] - 1) // s[d] if r < out_sz[d] else 0
            counts_d.append(q)
        taps.append(taps_d)
        counts.append(counts_d)

    # Pad y once so every (q + off) index is in range (out-of-range taps read 0).
    pad_lo, pad_hi = [], []
    for d in range(3):
        lo = hi = 0
        for r in range(s[d]):
            for _, off in taps[d][r]:
                lo = max(lo, -off)
                hi = max(hi, off + counts[d][r] - 1 - (in_sz[d] - 1))
        pad_lo.append(lo)
        pad_hi.append(hi)
    y_pad = jnp.pad(y, ((0, 0), (pad_lo[0], pad_hi[0]), (pad_lo[1], pad_hi[1]),
                        (pad_lo[2], pad_hi[2]), (0, 0)))

    # Fold the BN scale into the weight columns (inference-mode BN).
    w_scaled = w.astype(jnp.float32) * scale[None, :, None, None, None]

    out = jnp.zeros((N,) + out_sz + (Cout,), out_dtype)
    for rd in range(s[0]):
        for rh in range(s[1]):
            for rw in range(s[2]):
                Qd, Qh, Qw = counts[0][rd], counts[1][rh], counts[2][rw]
                if Qd == 0 or Qh == 0 or Qw == 0:
                    continue
                slabs, wcols = [], []
                for kd, off_d in taps[0][rd]:
                    for kh, off_h in taps[1][rh]:
                        for kw, off_w in taps[2][rw]:
                            d0 = pad_lo[0] + off_d
                            h0 = pad_lo[1] + off_h
                            w0 = pad_lo[2] + off_w
                            slabs.append(
                                y_pad[:, d0:d0 + Qd, h0:h0 + Qh, w0:w0 + Qw, :])
                            wcols.append(w_scaled[:, :, kd, kh, kw])  # (Cin, Cout)
                patches = jnp.concatenate(slabs, axis=-1)
                patches = patches.reshape(N * Qd * Qh * Qw, len(slabs) * Cin)
                wmat = jnp.concatenate(wcols, axis=0)                 # (T*Cin, Cout)
                o = matmul_shift_relu(patches, wmat, shift, out_dtype=out_dtype)
                o = o.reshape(N, Qd, Qh, Qw, Cout)
                out = out.at[:, rd::s[0], rh::s[1], rw::s[2], :].set(o)
    return out


# ----------------------------------------------------------------------------
# DecoderBlock forward
# ----------------------------------------------------------------------------
def decoder_block_init(key, in_channels, middle_channels, out_channels):
    ks = jax.random.split(key, 8)
    p = {}
    p["w1"] = 0.1 * jax.random.normal(ks[0], (middle_channels, in_channels, 3, 3, 3), jnp.float32)
    p["b1"] = 0.1 * jax.random.normal(ks[1], (middle_channels,), jnp.float32)
    p["bn1_g"] = 1.0 + 0.1 * jax.random.normal(ks[2], (middle_channels,), jnp.float32)
    p["bn1_b"] = 0.1 * jax.random.normal(ks[3], (middle_channels,), jnp.float32)
    p["bn1_m"] = jnp.zeros((middle_channels,), jnp.float32)
    p["bn1_v"] = jnp.ones((middle_channels,), jnp.float32)
    # PyTorch ConvTranspose3d weight layout: (Cin, Cout, kD, kH, kW)
    p["w2"] = 0.1 * jax.random.normal(ks[4], (middle_channels, out_channels, 3, 3, 3), jnp.float32)
    p["b2"] = 0.1 * jax.random.normal(ks[5], (out_channels,), jnp.float32)
    p["bn2_g"] = 1.0 + 0.1 * jax.random.normal(ks[6], (out_channels,), jnp.float32)
    p["bn2_b"] = 0.1 * jax.random.normal(ks[7], (out_channels,), jnp.float32)
    p["bn2_m"] = jnp.zeros((out_channels,), jnp.float32)
    p["bn2_v"] = jnp.ones((out_channels,), jnp.float32)
    return p


@functools.partial(jax.jit, static_argnames=("stride", "f"))
def decoder_block_forward(x_ncdhw, params, stride=None, f=None):
    """x_ncdhw: (N, Cin, D, H, W) — matches DecoderBlock.forward (eval mode)."""
    k = 3
    if stride:
        s, op = tuple(stride), (0, 1, 1)
    elif f:
        s, op = (2, 2, 2), (1, 0, 0)
    else:
        s, op = (2, 2, 2), (1, 1, 1)

    x = jnp.transpose(x_ncdhw, (0, 2, 3, 4, 1))            # NCDHW -> NDHWC
    N, D, H, W, Cin = x.shape
    Cmid = params["w1"].shape[0]

    # ---- Conv3d(3, s=1, p=1) + BN + ReLU: im2col + one fused Pallas matmul ----
    inv1, sh1 = _bn_fold(params["b1"], params["bn1_g"], params["bn1_b"],
                         params["bn1_m"], params["bn1_v"])
    w1 = jnp.transpose(params["w1"], (2, 3, 4, 1, 0)).reshape(k ** 3 * Cin, Cmid)
    w1 = w1 * inv1[None, :]                                # fold BN scale into weights
    a1, (_, Do, Ho, Wo) = _im2col_3d(x.astype(jnp.bfloat16), k,
                                     ((1, 1), (1, 1), (1, 1)))
    y1 = matmul_shift_relu(a1, w1, sh1, out_dtype=jnp.bfloat16)
    y1 = y1.reshape(N, Do, Ho, Wo, Cmid)

    # ---- ConvTranspose3d(3, stride=s, p=1, output_padding=op) + BN + ReLU ----
    inv2, sh2 = _bn_fold(params["b2"], params["bn2_g"], params["bn2_b"],
                         params["bn2_m"], params["bn2_v"])
    y2 = _conv_transpose3d_phases(y1, params["w2"], inv2, sh2,
                                  s, (1, 1, 1), op, out_dtype=jnp.float32)

    return jnp.transpose(y2, (0, 4, 1, 2, 3))              # NDHWC -> NCDHW


# ----------------------------------------------------------------------------
# Pure-XLA f32 reference (lax convs) used only for numerics checking in main
# ----------------------------------------------------------------------------
def _reference_decoder_block(x_ncdhw, p, stride=None, f=None):
    k = 3
    if stride:
        s, op = tuple(stride), (0, 1, 1)
    elif f:
        s, op = (2, 2, 2), (1, 0, 0)
    else:
        s, op = (2, 2, 2), (1, 1, 1)
    eps = 1e-5

    def bn_relu(z, bias, g, b, m, v):
        z = z + bias[None, :, None, None, None]
        z = (z - m[None, :, None, None, None]) * (
            g / jnp.sqrt(v + eps))[None, :, None, None, None] + b[None, :, None, None, None]
        return jnp.maximum(z, 0.0)

    y = lax.conv_general_dilated(
        x_ncdhw, p["w1"], window_strides=(1, 1, 1), padding=[(1, 1)] * 3,
        dimension_numbers=("NCDHW", "OIDHW", "NCDHW"),
        precision=lax.Precision.HIGHEST)
    y = bn_relu(y, p["b1"], p["bn1_g"], p["bn1_b"], p["bn1_m"], p["bn1_v"])

    # ConvTranspose3d == stride-1 conv over the lhs-dilated input with flipped kernel.
    w2 = jnp.transpose(p["w2"], (1, 0, 2, 3, 4))[:, :, ::-1, ::-1, ::-1]
    pads = [(k - 1 - 1, k - 1 - 1 + op[d]) for d in range(3)]
    z = lax.conv_general_dilated(
        y, w2, window_strides=(1, 1, 1), padding=pads, lhs_dilation=s,
        dimension_numbers=("NCDHW", "OIDHW", "NCDHW"),
        precision=lax.Precision.HIGHEST)
    z = bn_relu(z, p["b2"], p["bn2_g"], p["bn2_b"], p["bn2_m"], p["bn2_v"])
    return z


if __name__ == "__main__":
    key = jax.random.PRNGKey(0)
    k_x, k_p = jax.random.split(key)

    in_channels, middle_channels, out_channels = 4, 8, 4
    N, D, H, W = 2, 4, 4, 4
    x = jax.random.normal(k_x, (N, in_channels, D, H, W), jnp.float32)
    params = decoder_block_init(k_p, in_channels, middle_channels, out_channels)

    configs = [
        (dict(stride=None, f=None), (N, out_channels, 2 * D, 2 * H, 2 * W)),
        (dict(stride=None, f=1), (N, out_channels, 2 * D, 2 * H - 1, 2 * W - 1)),
        (dict(stride=(1, 2, 2), f=None), (N, out_channels, D, 2 * H, 2 * W)),
    ]
    for kwargs, expected_shape in configs:
        out = jax.block_until_ready(decoder_block_forward(x, params, **kwargs))
        assert out.shape == expected_shape, (out.shape, expected_shape)
        assert bool(jnp.all(jnp.isfinite(out)))
        assert bool(jnp.all(out >= 0.0))            # final ReLU

        ref = _reference_decoder_block(x, params, **kwargs)
        err = float(jnp.max(jnp.abs(out - ref)))
        tol = 0.08 * (1.0 + float(jnp.max(jnp.abs(ref))))   # bf16 operand drift
        assert err <= tol, (err, tol)

    # Exercise the K-tiled accumulator fallback path once (used for very large K).
    a_t = jax.random.normal(jax.random.PRNGKey(1), (64, 200), jnp.float32)
    b_t = jax.random.normal(jax.random.PRNGKey(2), (200, 8), jnp.float32)
    s_t = jax.random.normal(jax.random.PRNGKey(3), (8,), jnp.float32)
    got = jax.block_until_ready(
        matmul_shift_relu(a_t, b_t, s_t, vmem_budget_bytes=0, tk=128))
    want = jnp.maximum(a_t @ b_t + s_t[None, :], 0.0)
    err = float(jnp.max(jnp.abs(got - want)))
    assert err <= 0.08 * (1.0 + float(jnp.max(jnp.abs(want)))), err

    print("KERNEL_OK")
</pallas_src>

<mosaic_0001>
module attributes {stable_mosaic.version = 11 : i64} {
  func.func @_mm_shift_relu_kernel(%arg0: i32, %arg1: i32, %arg2: memref<128x112xbf16, #tpu.memory_space<vmem>>, %arg3: memref<112x128xbf16, #tpu.memory_space<vmem>>, %arg4: memref<1x128xf32, #tpu.memory_space<vmem>>, %arg5: memref<128x128xbf16, #tpu.memory_space<vmem>>) attributes {dimension_semantics = [#tpu.dimension_semantics<parallel>, #tpu.dimension_semantics<parallel>], iteration_bounds = array<i64: 1, 1>, scalar_prefetch = 0 : i64, scratch_operands = 0 : i64, tpu.core_type = #tpu.core_type<tc>, window_params = [{transform_indices = @transform_0, window_bounds = array<i64: 128, 112>}, {transform_indices = @transform_1, window_bounds = array<i64: 112, 128>}, {transform_indices = @transform_2, window_bounds = array<i64: 1, 128>}, {transform_indices = @transform_3, window_bounds = array<i64: 128, 128>}]} {
    %c0 = arith.constant 0 : index
    %c0_0 = arith.constant 0 : index
    %0 = vector.load %arg2[%c0, %c0_0] : memref<128x112xbf16, #tpu.memory_space<vmem>>, vector<128x112xbf16>
    %c0_1 = arith.constant 0 : index
    %c0_2 = arith.constant 0 : index
    %1 = vector.load %arg3[%c0_1, %c0_2] : memref<112x128xbf16, #tpu.memory_space<vmem>>, vector<112x128xbf16>
    %cst = arith.constant dense<0.000000e+00> : vector<128x128xf32>
    %2 = tpu.matmul %0, %1, %cst {dimension_numbers = #tpu.dot_dimension_numbers<[1], [0], [0], [1], [0, 0, 1, 1], [], []>} : vector<128x112xbf16>, vector<112x128xbf16>, vector<128x128xf32> -> vector<128x128xf32>
    %c0_3 = arith.constant 0 : index
    %c0_4 = arith.constant 0 : index
    %3 = vector.load %arg4[%c0_3, %c0_4] : memref<1x128xf32, #tpu.memory_space<vmem>>, vector<1x128xf32>
    %4 = vector.broadcast %3 : vector<1x128xf32> to vector<128x128xf32>
    %5 = arith.addf %2, %4 : vector<128x128xf32>
    %cst_5 = arith.constant 0.000000e+00 : f32
    %6 = vector.broadcast %cst_5 : f32 to vector<128x128xf32>
    %7 = arith.maximumf %5, %6 : vector<128x128xf32>
    %8 = arith.truncf %7 : vector<128x128xf32> to vector<128x128xbf16>
    %c0_6 = arith.constant 0 : index
    %c0_7 = arith.constant 0 : index
    %9 = vector.load %arg5[%c0_6, %c0_7] : memref<128x128xbf16, #tpu.memory_space<vmem>>, vector<128x128xbf16>
    tpu.vector_store %arg5[%c0_6, %c0_7], %8 {strides = array<i32>} : memref<128x128xbf16, #tpu.memory_space<vmem>>, vector<128x128xbf16>,
    return
  }
  func.func @transform_0(%arg0: i32, %arg1: i32) -> (i32, i32) {
    %c0_i32 = arith.constant 0 : i32
    %c0_i32_0 = arith.constant 0 : i32
    return %arg0, %c0_i32 : i32, i32
  }
  func.func @transform_1(%arg0: i32, %arg1: i32) -> (i32, i32) {
    %c0_i32 = arith.constant 0 : i32
    %c0_i32_0 = arith.constant 0 : i32
    return %c0_i32, %arg1 : i32, i32
  }
  func.func @transform_2(%arg0: i32, %arg1: i32) -> (i32, i32) {
    %c0_i32 = arith.constant 0 : i32
    %c0_i32_0 = arith.constant 0 : i32
    return %c0_i32, %arg1 : i32, i32
  }
  func.func @transform_3(%arg0: i32, %arg1: i32) -> (i32, i32) {
    %c0_i32 = arith.constant 0 : i32
    return %arg0, %arg1 : i32, i32
  }
}

module attributes {stable_mosaic.version = 11 : i64} {
  func.func @_mm_shift_relu_kernel(%arg0: i32, %arg1: i32, %arg2: memref<128x64xbf16, #tpu.memory_space<vmem>>, %arg3: memref<64x128xbf16, #tpu.memory_space<vmem>>, %arg4: memref<1x128xf32, #tpu.memory_space<vmem>>, %arg5: memref<128x128xf32, #tpu.memory_space<vmem>>) attributes {dimension_semantics = [#tpu.dimension_semantics<parallel>, #tpu.dimension_semantics<parallel>], iteration_bounds = array<i64: 1, 1>, scalar_prefetch = 0 : i64, scratch_operands = 0 : i64, tpu.core_type = #tpu.core_type<tc>, window_params = [{transform_indices = @transform_0, window_bounds = array<i64: 128, 64>}, {transform_indices = @transform_1, window_bounds = array<i64: 64, 128>}, {transform_indices = @transform_2, window_bounds = array<i64: 1, 128>}, {transform_indices = @transform_3, window_bounds = array<i64: 128, 128>}]} {
    %c0 = arith.constant 0 : index
    %c0_0 = arith.constant 0 : index
    %0 = vector.load %arg2[%c0, %c0_0] : memref<128x64xbf16, #tpu.memory_space<vmem>>, vector<128x64xbf16>
    %c0_1 = arith.constant 0 : index
    %c0_2 = arith.constant 0 : index
    %1 = vector.load %arg3[%c0_1, %c0_2] : memref<64x128xbf16, #tpu.memory_space<vmem>>, vector<64x128xbf16>
    %cst = arith.constant dense<0.000000e+00> : vector<128x128xf32>
    %2 = tpu.matmul %0, %1, %cst {dimension_numbers = #tpu.dot_dimension_numbers<[1], [0], [0], [1], [0, 0, 1, 1], [], []>} : vector<128x64xbf16>, vector<64x128xbf16>, vector<128x128xf32> -> vector<128x128xf32>
    %c0_3 = arith.constant 0 : index
    %c0_4 = arith.constant 0 : index
    %3 = vector.load %arg4[%c0_3, %c0_4] : memref<1x128xf32, #tpu.memory_space<vmem>>, vector<1x128xf32>
    %4 = vector.broadcast %3 : vector<1x128xf32> to vector<128x128xf32>
    %5 = arith.addf %2, %4 : vector<128x128xf32>
    %cst_5 = arith.constant 0.000000e+00 : f32
    %6 = vector.broadcast %cst_5 : f32 to vector<128x128xf32>
    %7 = arith.maximumf %5, %6 : vector<128x128xf32>
    %c0_6 = arith.constant 0 : index
    %c0_7 = arith.constant 0 : index
    %8 = vector.load %arg5[%c0_6, %c0_7] : memref<128x128xf32, #tpu.memory_space<vmem>>, vector<128x128xf32>
    tpu.vector_store %arg5[%c0_6, %c0_7], %7 {strides = array<i32>} : memref<128x128xf32, #tpu.memory_space<vmem>>, vector<128x128xf32>,
    return
  }
  func.func @transform_0(%arg0: i32, %arg1: i32) -> (i32, i32) {
    %c0_i32 = arith.constant 0 : i32
    %c0_i32_0 = arith.constant 0 : i32
    return %arg0, %c0_i32 : i32, i32
  }
  func.func @transform_1(%arg0: i32, %arg1: i32) -> (i32, i32) {
    %c0_i32 = arith.constant 0 : i32
    %c0_i32_0 = arith.constant 0 : i32
    return %c0_i32, %arg1 : i32, i32
  }
  func.func @transform_2(%arg0: i32, %arg1: i32) -> (i32, i32) {
    %c0_i32 = arith.constant 0 : i32
    %c0_i32_0 = arith.constant 0 : i32
    return %c0_i32, %arg1 : i32, i32
  }
  func.func @transform_3(%arg0: i32, %arg1: i32) -> (i32, i32) {
    %c0_i32 = arith.constant 0 : i32
    return %arg0, %arg1 : i32, i32
  }
}

module attributes {stable_mosaic.version = 11 : i64} {
  func.func @_mm_shift_relu_kernel(%arg0: i32, %arg1: i32, %arg2: memref<128x32xbf16, #tpu.memory_space<vmem>>, %arg3: memref<32x128xbf16, #tpu.memory_space<vmem>>, %arg4: memref<1x128xf32, #tpu.memory_space<vmem>>, %arg5: memref<128x128xf32, #tpu.memory_space<vmem>>) attributes {dimension_semantics = [#tpu.dimension_semantics<parallel>, #tpu.dimension_semantics<parallel>], iteration_bounds = array<i64: 1, 1>, scalar_prefetch = 0 : i64, scratch_operands = 0 : i64, tpu.core_type = #tpu.core_type<tc>, window_params = [{transform_indices = @transform_0, window_bounds = array<i64: 128, 32>}, {transform_indices = @transform_1, window_bounds = array<i64: 32, 128>}, {transform_indices = @transform_2, window_bounds = array<i64: 1, 128>}, {transform_indices = @transform_3, window_bounds = array<i64: 128, 128>}]} {
    %c0 = arith.constant 0 : index
    %c0_0 = arith.constant 0 : index
    %0 = vector.load %arg2[%c0, %c0_0] : memref<128x32xbf16, #tpu.memory_space<vmem>>, vector<128x32xbf16>
    %c0_1 = arith.constant 0 : index
    %c0_2 = arith.constant 0 : index
    %1 = vector.load %arg3[%c0_1, %c0_2] : memref<32x128xbf16, #tpu.memory_space<vmem>>, vector<32x128xbf16>
    %cst = arith.constant dense<0.000000e+00> : vector<128x128xf32>
    %2 = tpu.matmul %0, %1, %cst {dimension_numbers = #tpu.dot_dimension_numbers<[1], [0], [0], [1], [0, 0, 1, 1], [], []>} : vector<128x32xbf16>, vector<32x128xbf16>, vector<128x128xf32> -> vector<128x128xf32>
    %c0_3 = arith.constant 0 : index
    %c0_4 = arith.constant 0 : index
    %3 = vector.load %arg4[%c0_3, %c0_4] : memref<1x128xf32, #tpu.memory_space<vmem>>, vector<1x128xf32>
    %4 = vector.broadcast %3 : vector<1x128xf32> to vector<128x128xf32>
    %5 = arith.addf %2, %4 : vector<128x128xf32>
    %cst_5 = arith.constant 0.000000e+00 : f32
    %6 = vector.broadcast %cst_5 : f32 to vector<128x128xf32>
    %7 = arith.maximumf %5, %6 : vector<128x128xf32>
    %c0_6 = arith.constant 0 : index
    %c0_7 = arith.constant 0 : index
    %8 = vector.load %arg5[%c0_6, %c0_7] : memref<128x128xf32, #tpu.memory_space<vmem>>, vector<128x128xf32>
    tpu.vector_store %arg5[%c0_6, %c0_7], %7 {strides = array<i32>} : memref<128x128xf32, #tpu.memory_space<vmem>>, vector<128x128xf32>,
    return
  }
  func.func @transform_0(%arg0: i32, %arg1: i32) -> (i32, i32) {
    %c0_i32 = arith.constant 0 : i32
    %c0_i32_0 = arith.constant 0 : i32
    return %arg0, %c0_i32 : i32, i32
  }
  func.func @transform_1(%arg0: i32, %arg1: i32) -> (i32, i32) {
    %c0_i32 = arith.constant 0 : i32
    %c0_i32_0 = arith.constant 0 : i32
    return %c0_i32, %arg1 : i32, i32
  }
  func.func @transform_2(%arg0: i32, %arg1: i32) -> (i32, i32) {
    %c0_i32 = arith.constant 0 : i32
    %c0_i32_0 = arith.constant 0 : i32
    return %c0_i32, %arg1 : i32, i32
  }
  func.func @transform_3(%arg0: i32, %arg1: i32) -> (i32, i32) {
    %c0_i32 = arith.constant 0 : i32
    return %arg0, %arg1 : i32, i32
  }
}

module attributes {stable_mosaic.version = 11 : i64} {
  func.func @_mm_shift_relu_kernel(%arg0: i32, %arg1: i32, %arg2: memref<128x16xbf16, #tpu.memory_space<vmem>>, %arg3: memref<16x128xbf16, #tpu.memory_space<vmem>>, %arg4: memref<1x128xf32, #tpu.memory_space<vmem>>, %arg5: memref<128x128xf32, #tpu.memory_space<vmem>>) attributes {dimension_semantics = [#tpu.dimension_semantics<parallel>, #tpu.dimension_semantics<parallel>], iteration_bounds = array<i64: 1, 1>, scalar_prefetch = 0 : i64, scratch_operands = 0 : i64, tpu.core_type = #tpu.core_type<tc>, window_params = [{transform_indices = @transform_0, window_bounds = array<i64: 128, 16>}, {transform_indices = @transform_1, window_bounds = array<i64: 16, 128>}, {transform_indices = @transform_2, window_bounds = array<i64: 1, 128>}, {transform_indices = @transform_3, window_bounds = array<i64: 128, 128>}]} {
    %c0 = arith.constant 0 : index
    %c0_0 = arith.constant 0 : index
    %0 = vector.load %arg2[%c0, %c0_0] : memref<128x16xbf16, #tpu.memory_space<vmem>>, vector<128x16xbf16>
    %c0_1 = arith.constant 0 : index
    %c0_2 = arith.constant 0 : index
    %1 = vector.load %arg3[%c0_1, %c0_2] : memref<16x128xbf16, #tpu.memory_space<vmem>>, vector<16x128xbf16>
    %cst = arith.constant dense<0.000000e+00> : vector<128x128xf32>
    %2 = tpu.matmul %0, %1, %cst {dimension_numbers = #tpu.dot_dimension_numbers<[1], [0], [0], [1], [0, 0, 1, 1], [], []>} : vector<128x16xbf16>, vector<16x128xbf16>, vector<128x128xf32> -> vector<128x128xf32>
    %c0_3 = arith.constant 0 : index
    %c0_4 = arith.constant 0 : index
    %3 = vector.load %arg4[%c0_3, %c0_4] : memref<1x128xf32, #tpu.memory_space<vmem>>, vector<1x128xf32>
    %4 = vector.broadcast %3 : vector<1x128xf32> to vector<128x128xf32>
    %5 = arith.addf %2, %4 : vector<128x128xf32>
    %cst_5 = arith.constant 0.000000e+00 : f32
    %6 = vector.broadcast %cst_5 : f32 to vector<128x128xf32>
    %7 = arith.maximumf %5, %6 : vector<128x128xf32>
    %c0_6 = arith.constant 0 : index
    %c0_7 = arith.constant 0 : index
    %8 = vector.load %arg5[%c0_6, %c0_7] : memref<128x128xf32, #tpu.memory_space<vmem>>, vector<128x128xf32>
    tpu.vector_store %arg5[%c0_6, %c0_7], %7 {strides = array<i32>} : memref<128x128xf32, #tpu.memory_space<vmem>>, vector<128x128xf32>,
    return
  }
  func.func @transform_0(%arg0: i32, %arg1: i32) -> (i32, i32) {
    %c0_i32 = arith.constant 0 : i32
    %c0_i32_0 = arith.constant 0 : i32
    return %arg0, %c0_i32 : i32, i32
  }
  func.func @transform_1(%arg0: i32, %arg1: i32) -> (i32, i32) {
    %c0_i32 = arith.constant 0 : i32
    %c0_i32_0 = arith.constant 0 : i32
    return %c0_i32, %arg1 : i32, i32
  }
  func.func @transform_2(%arg0: i32, %arg1: i32) -> (i32, i32) {
    %c0_i32 = arith.constant 0 : i32
    %c0_i32_0 = arith.constant 0 : i32
    return %c0_i32, %arg1 : i32, i32
  }
  func.func @transform_3(%arg0: i32, %arg1: i32) -> (i32, i32) {
    %c0_i32 = arith.constant 0 : i32
    return %arg0, %arg1 : i32, i32
  }
}

</mosaic_0001>

<llo_original>
// kernel: decoder_block_forward.9
$region0: #{decoder_block_forward.9}
  #allocation0 [shape = 'u32[]', space=smem, size = 0x4, offset = 0x4, fixed_abs, tag = 'smem constant byte address 0x4 - core index']
  #allocation1 [shape = 'u32[72,128]{1,0:T(1,128)}', space=vmem, size = 0x9000, scoped, tag = 'internal scratch']
  %s0 = inlined_call_operand.vmem [shape: bf16[128,112], index: 0, kind: input, shape index: {}]
  %s1 = inlined_call_operand.vmem [shape: bf16[112,128], index: 1, kind: input, shape index: {}]
  %s2 = inlined_call_operand.vmem [shape: f32[1,128], index: 2, kind: input, shape index: {}]
  %s3 = inlined_call_operand.vmem [shape: bf16[128,128], index: 3, kind: output, shape index: {}]
  %s4 = sld [smem:[#allocation0]]
  $region22: #{decoder_block_forward.9} parent=0
    _
  %s6 = ssub.s32 1, %s4
  %s7 = scalar_select 0, %s6, %s4
  // Predicated region
  $region2: #{decoder_block_forward.9} parent=0 // pred_check
    _
  $region3: #{decoder_block_forward.9} parent=0 // pred_check_branch
    %9 = sbr.rel (0) target = $region5
  $region4: #{decoder_block_forward.9} parent=0 // pred_region
    _
  $region5: #{decoder_block_forward.9} parent=0 // pred_fallthru
    _
  // Predicated region
  $region6: #{decoder_block_forward.9} parent=0 // pred_check
    _
  $region7: #{decoder_block_forward.9} parent=0 // pred_check_branch
    %11 = sbr.rel (0) target = $region9
  $region8: #{decoder_block_forward.9} parent=0 // pred_region
    _
  $region9: #{decoder_block_forward.9} parent=0 // pred_fallthru
    _
  // Predicated region
  $region10: #{decoder_block_forward.9} parent=0 // pred_check
    _
  $region11: #{decoder_block_forward.9} parent=0 // pred_check_branch
    %13 = sbr.rel (0) target = $region13
  $region12: #{decoder_block_forward.9} parent=0 // pred_region
    _
  $region13: #{decoder_block_forward.9} parent=0 // pred_fallthru
    _
  %v15 = vld [vmem:[%s0] sm:$0xf]
  %v16 = vld [vmem:[%s0 + $0x4] sm:$0xf]
  %v17 = vld [vmem:[%s0 + $0x8] sm:$0xf]
  %v18 = vld [vmem:[%s0 + $0xc] sm:$0xf]
  %v19 = vld [vmem:[%s0 + $0x10] sm:$0xf]
  %v20 = vld [vmem:[%s0 + $0x14] sm:$0xf]
  %v21 = vld [vmem:[%s0 + $0x18] sm:$0xf]
  %v22 = vld [vmem:[%s0 + $0x1c] sm:$0xf]
  %v23 = vld [vmem:[%s0 + $0x20] sm:$0xf]
  %v24 = vld [vmem:[%s0 + $0x24] sm:$0xf]
  %v25 = vld [vmem:[%s0 + $0x28] sm:$0xf]
  %v26 = vld [vmem:[%s0 + $0x2c] sm:$0xf]
  %v27 = vld [vmem:[%s0 + $0x30] sm:$0xf]
  %v28 = vld [vmem:[%s0 + $0x34] sm:$0xf]
  %v29 = vld [vmem:[%s0 + $0x38] sm:$0xf]
  %v30 = vld [vmem:[%s0 + $0x3c] sm:$0xf]
  %v31 = vld [vmem:[%s1] sm:$0xf]
  %v32 = vld [vmem:[%s1 + $0x4] sm:$0xf]
  %v33 = vld [vmem:[%s1 + $0x8] sm:$0xf]
  %v34 = vld [vmem:[%s1 + $0xc] sm:$0xf]
  %v35 = vld [vmem:[%s1 + $0x10] sm:$0xf]
  %v36 = vld [vmem:[%s1 + $0x14] sm:$0xf]
  %v37 = vld [vmem:[%s1 + $0x18] sm:$0xf]
  %v38 = vld [vmem:[%s1 + $0x1c] sm:$0xf]
  %v39 = vld [vmem:[%s1 + $0x20] sm:$0xf]
  %v40 = vld [vmem:[%s1 + $0x24] sm:$0xf]
  %v41 = vld [vmem:[%s1 + $0x28] sm:$0xf]
  %v42 = vld [vmem:[%s1 + $0x2c] sm:$0xf]
  %v43 = vld [vmem:[%s1 + $0x30] sm:$0xf]
  %v44 = vld [vmem:[%s1 + $0x34] sm:$0xf]
  %v45 = vld [vmem:[%s2] sm:$0x1]
  %v47 = vperm.slane %v45, 0
  %v65 = vunpack.c.l.b16 %v15
  %v66 = vunpack.c.l.b16 %v16
  %v67 = vunpack.c.l.b16 %v17
  %v68 = vunpack.c.l.b16 %v18
  %v69 = vunpack.c.l.b16 %v19
  %v70 = vunpack.c.l.b16 %v20
  %v71 = vunpack.c.l.b16 %v21
  %v72 = vunpack.c.l.b16 %v22
  %v73 = vunpack.c.l.b16 %v23
  %v74 = vunpack.c.l.b16 %v24
  %v75 = vunpack.c.l.b16 %v25
  %v76 = vunpack.c.l.b16 %v26
  %v77 = vunpack.c.l.b16 %v27
  %v78 = vunpack.c.l.b16 %v28
  %v79 = vunpack.c.l.b16 %v29
  %v80 = vunpack.c.l.b16 %v30
  %v81 = vpack.c.b16 %v66, %v65
  %v82 = vpack.c.b16 %v68, %v67
  %v83 = vpack.c.b16 %v70, %v69
  %v84 = vpack.c.b16 %v72, %v71
  %v85 = vpack.c.b16 %v74, %v73
  %v86 = vpack.c.b16 %v76, %v75
  %v87 = vpack.c.b16 %v78, %v77
  %v88 = vpack.c.b16 %v80, %v79
  %v103 = vunpack.c.l.b16 %v31
  %v104 = vunpack.c.l.b16 %v32
  %v105 = vunpack.c.l.b16 %v33
  %v106 = vunpack.c.l.b16 %v34
  %v107 = vunpack.c.l.b16 %v35
  %v108 = vunpack.c.l.b16 %v36
  %v109 = vunpack.c.l.b16 %v37
  %v110 = vunpack.c.l.b16 %v38
  %v111 = vunpack.c.l.b16 %v39
  %v112 = vunpack.c.l.b16 %v40
  %v113 = vunpack.c.l.b16 %v41
  %v114 = vunpack.c.l.b16 %v42
  %v115 = vunpack.c.l.b16 %v43
  %v116 = vunpack.c.l.b16 %v44
  %v117 = vpack.c.b16 %v104, %v103
  %v118 = vpack.c.b16 %v106, %v105
  %v119 = vpack.c.b16 %v108, %v107
  %v120 = vpack.c.b16 %v110, %v109
  %v121 = vpack.c.b16 %v112, %v111
  %v122 = vpack.c.b16 %v114, %v113
  %v123 = vpack.c.b16 %v116, %v115
  %vm131 = vcmask 916480
  %v133 = vsel %vm131, %v81, 0
  %v136 = vsel %vm131, %v82, 0
  %v139 = vsel %vm131, %v83, 0
  %v142 = vsel %vm131, %v84, 0
  %v145 = vsel %vm131, %v85, 0
  %v148 = vsel %vm131, %v86, 0
  %v151 = vsel %vm131, %v87, 0
  %v154 = vsel %vm131, %v88, 0
  %156 = vmatpush.bf16.msra.mxu0 0
  %157 = vmatpush.bf16.msra.mxu0 %v123
  %158 = vmatpush.bf16.msra.mxu0 %v122
  %159 = vmatpush.bf16.msra.mxu0 %v121
  %160 = vmatpush.bf16.msra.mxu0 %v120
  %161 = vmatpush.bf16.msra.mxu0 %v119
  %162 = vmatpush.bf16.msra.mxu0 %v118
  %163 = vmatpush.bf16.msra.mxu0 %v117
  %164 = vmatmul.bf16.gmra.mxu0 %v133
  %v165 = vpop.f32.mrf.mxu0
  %v166 = vadd.f32 %v47, %v165
  %v167 = vpop.f32.mrf.mxu0
  %v168 = vadd.f32 %v47, %v167
  %169 = vmatmul.bf16.gmra.mxu0 %v136
  %v170 = vpop.f32.mrf.mxu0
  %v171 = vadd.f32 %v47, %v170
  %v172 = vpop.f32.mrf.mxu0
  %v173 = vadd.f32 %v47, %v172
  %174 = vmatmul.bf16.gmra.mxu0 %v139
  %v175 = vpop.f32.mrf.mxu0
  %v176 = vadd.f32 %v47, %v175
  %v177 = vpop.f32.mrf.mxu0
  %v178 = vadd.f32 %v47, %v177
  %179 = vmatmul.bf16.gmra.mxu0 %v142
  %v180 = vpop.f32.mrf.mxu0
  %v181 = vadd.f32 %v47, %v180
  %v182 = vpop.f32.mrf.mxu0
  %v183 = vadd.f32 %v47, %v182
  %184 = vmatmul.bf16.gmra.mxu0 %v145
  %v185 = vpop.f32.mrf.mxu0
  %v186 = vadd.f32 %v47, %v185
  %v187 = vpop.f32.mrf.mxu0
  %v188 = vadd.f32 %v47, %v187
  %189 = vmatmul.bf16.gmra.mxu0 %v148
  %v190 = vpop.f32.mrf.mxu0
  %v191 = vadd.f32 %v47, %v190
  %v192 = vpop.f32.mrf.mxu0
  %v193 = vadd.f32 %v47, %v192
  %194 = vmatmul.bf16.gmra.mxu0 %v151
  %v195 = vpop.f32.mrf.mxu0
  %v196 = vadd.f32 %v47, %v195
  %v197 = vpop.f32.mrf.mxu0
  %v198 = vadd.f32 %v47, %v197
  %199 = vmatmul.bf16.gmra.mxu0 %v154
  %v200 = vpop.f32.mrf.mxu0
  %v201 = vadd.f32 %v47, %v200
  %v202 = vpop.f32.mrf.mxu0
  %v203 = vadd.f32 %v47, %v202
  %204 = vdwg.mxu0
  %v205 = vmax.f32 %v166, 0.0
  %v206 = vmax.f32 %v168, 0.0
  %v207 = vmax.f32 %v171, 0.0
  %v208 = vmax.f32 %v173, 0.0
  %v209 = vmax.f32 %v176, 0.0
  %v210 = vmax.f32 %v178, 0.0
  %v211 = vmax.f32 %v181, 0.0
  %v212 = vmax.f32 %v183, 0.0
  %v213 = vmax.f32 %v186, 0.0
  %v214 = vmax.f32 %v188, 0.0
  %v215 = vmax.f32 %v191, 0.0
  %v216 = vmax.f32 %v193, 0.0
  %v217 = vmax.f32 %v196, 0.0
  %v218 = vmax.f32 %v198, 0.0
  %v219 = vmax.f32 %v201, 0.0
  %v220 = vmax.f32 %v203, 0.0
  %v221 = vpack.c.bf16 %v205, %v205
  %v222 = vpack.c.bf16 %v206, %v206
  %v223 = vpack.c.bf16 %v207, %v207
  %v224 = vpack.c.bf16 %v208, %v208
  %v225 = vpack.c.bf16 %v209, %v209
  %v226 = vpack.c.bf16 %v210, %v210
  %v227 = vpack.c.bf16 %v211, %v211
  %v228 = vpack.c.bf16 %v212, %v212
  %v229 = vpack.c.bf16 %v213, %v213
  %v230 = vpack.c.bf16 %v214, %v214
  %v231 = vpack.c.bf16 %v215, %v215
  %v232 = vpack.c.bf16 %v216, %v216
  %v233 = vpack.c.bf16 %v217, %v217
  %v234 = vpack.c.bf16 %v218, %v218
  %v235 = vpack.c.bf16 %v219, %v219
  %v236 = vpack.c.bf16 %v220, %v220
  %237 = vst [vmem:[%s3] sm:$0xf] %v221
  %238 = vst [vmem:[%s3 + $0x4] sm:$0xf] %v222
  %239 = vst [vmem:[%s3 + $0x8] sm:$0xf] %v223
  %240 = vst [vmem:[%s3 + $0xc] sm:$0xf] %v224
  %241 = vst [vmem:[%s3 + $0x10] sm:$0xf] %v225
  %242 = vst [vmem:[%s3 + $0x14] sm:$0xf] %v226
  %243 = vst [vmem:[%s3 + $0x18] sm:$0xf] %v227
  %244 = vst [vmem:[%s3 + $0x1c] sm:$0xf] %v228
  %245 = vst [vmem:[%s3 + $0x20] sm:$0xf] %v229
  %246 = vst [vmem:[%s3 + $0x24] sm:$0xf] %v230
  %247 = vst [vmem:[%s3 + $0x28] sm:$0xf] %v231
  %248 = vst [vmem:[%s3 + $0x2c] sm:$0xf] %v232
  %249 = vst [vmem:[%s3 + $0x30] sm:$0xf] %v233
  %250 = vst [vmem:[%s3 + $0x34] sm:$0xf] %v234
  %251 = vst [vmem:[%s3 + $0x38] sm:$0xf] %v235
  %252 = vst [vmem:[%s3 + $0x3c] sm:$0xf] %v236
  // Predicated region
  $region14: #{decoder_block_forward.9} parent=0 // pred_check
    _
  $region15: #{decoder_block_forward.9} parent=0 // pred_check_branch
    %254 = sbr.rel (0) target = $region17
  $region16: #{decoder_block_forward.9} parent=0 // pred_region
    _
  $region17: #{decoder_block_forward.9} parent=0 // pred_fallthru
    _
  // Predicated region
  $region18: #{decoder_block_forward.9} parent=0 // pred_check
    _
  $region19: #{decoder_block_forward.9} parent=0 // pred_check_branch
    %256 = sbr.rel (0) target = $region21
  $region20: #{decoder_block_forward.9} parent=0 // pred_region
    _
  $region21: #{decoder_block_forward.9} parent=0 // pred_fallthru
    _

// kernel: decoder_block_forward.17
$region0: #{decoder_block_forward.17}
  #allocation0 [shape = 'u32[]', space=smem, size = 0x4, offset = 0x4, fixed_abs, tag = 'smem constant byte address 0x4 - core index']
  #allocation1 [shape = 'u32[72,128]{1,0:T(1,128)}', space=vmem, size = 0x9000, scoped, tag = 'internal scratch']
  %s0 = inlined_call_operand.vmem [shape: bf16[128,64], index: 0, kind: input, shape index: {}]
  %s1 = inlined_call_operand.vmem [shape: bf16[64,128], index: 1, kind: input, shape index: {}]
  %s2 = inlined_call_operand.vmem [shape: f32[1,128], index: 2, kind: input, shape index: {}]
  %s3 = inlined_call_operand.vmem [shape: f32[128,128], index: 3, kind: output, shape index: {}]
  %s4 = sld [smem:[#allocation0]]
  $region22: #{decoder_block_forward.17} parent=0
    _
  %s6 = ssub.s32 1, %s4
  %s7 = scalar_select 0, %s6, %s4
  // Predicated region
  $region2: #{decoder_block_forward.17} parent=0 // pred_check
    _
  $region3: #{decoder_block_forward.17} parent=0 // pred_check_branch
    %9 = sbr.rel (0) target = $region5
  $region4: #{decoder_block_forward.17} parent=0 // pred_region
    _
  $region5: #{decoder_block_forward.17} parent=0 // pred_fallthru
    _
  // Predicated region
  $region6: #{decoder_block_forward.17} parent=0 // pred_check
    _
  $region7: #{decoder_block_forward.17} parent=0 // pred_check_branch
    %11 = sbr.rel (0) target = $region9
  $region8: #{decoder_block_forward.17} parent=0 // pred_region
    _
  $region9: #{decoder_block_forward.17} parent=0 // pred_fallthru
    _
  // Predicated region
  $region10: #{decoder_block_forward.17} parent=0 // pred_check
    _
  $region11: #{decoder_block_forward.17} parent=0 // pred_check_branch
    %13 = sbr.rel (0) target = $region13
  $region12: #{decoder_block_forward.17} parent=0 // pred_region
    _
  $region13: #{decoder_block_forward.17} parent=0 // pred_fallthru
    _
  %v15 = vld [vmem:[%s0] sm:$0xf]
  %v16 = vld [vmem:[%s0 + $0x4] sm:$0xf]
  %v17 = vld [vmem:[%s0 + $0x8] sm:$0xf]
  %v18 = vld [vmem:[%s0 + $0xc] sm:$0xf]
  %v19 = vld [vmem:[%s0 + $0x10] sm:$0xf]
  %v20 = vld [vmem:[%s0 + $0x14] sm:$0xf]
  %v21 = vld [vmem:[%s0 + $0x18] sm:$0xf]
  %v22 = vld [vmem:[%s0 + $0x1c] sm:$0xf]
  %v23 = vld [vmem:[%s0 + $0x20] sm:$0xf]
  %v24 = vld [vmem:[%s0 + $0x24] sm:$0xf]
  %v25 = vld [vmem:[%s0 + $0x28] sm:$0xf]
  %v26 = vld [vmem:[%s0 + $0x2c] sm:$0xf]
  %v27 = vld [vmem:[%s0 + $0x30] sm:$0xf]
  %v28 = vld [vmem:[%s0 + $0x34] sm:$0xf]
  %v29 = vld [vmem:[%s0 + $0x38] sm:$0xf]
  %v30 = vld [vmem:[%s0 + $0x3c] sm:$0xf]
  %v31 = vld [vmem:[%s1] sm:$0xf]
  %v32 = vld [vmem:[%s1 + $0x4] sm:$0xf]
  %v33 = vld [vmem:[%s1 + $0x8] sm:$0xf]
  %v34 = vld [vmem:[%s1 + $0xc] sm:$0xf]
  %v35 = vld [vmem:[%s1 + $0x10] sm:$0xf]
  %v36 = vld [vmem:[%s1 + $0x14] sm:$0xf]
  %v37 = vld [vmem:[%s1 + $0x18] sm:$0xf]
  %v38 = vld [vmem:[%s1 + $0x1c] sm:$0xf]
  %v39 = vld [vmem:[%s2] sm:$0x1]
  %v41 = vperm.slane %v39, 0
  %v59 = vunpack.c.l.b16 %v15
  %v60 = vunpack.c.l.b16 %v16
  %v61 = vunpack.c.l.b16 %v17
  %v62 = vunpack.c.l.b16 %v18
  %v63 = vunpack.c.l.b16 %v19
  %v64 = vunpack.c.l.b16 %v20
  %v65 = vunpack.c.l.b16 %v21
  %v66 = vunpack.c.l.b16 %v22
  %v67 = vunpack.c.l.b16 %v23
  %v68 = vunpack.c.l.b16 %v24
  %v69 = vunpack.c.l.b16 %v25
  %v70 = vunpack.c.l.b16 %v26
  %v71 = vunpack.c.l.b16 %v27
  %v72 = vunpack.c.l.b16 %v28
  %v73 = vunpack.c.l.b16 %v29
  %v74 = vunpack.c.l.b16 %v30
  %v75 = vpack.c.b16 %v60, %v59
  %v76 = vpack.c.b16 %v62, %v61
  %v77 = vpack.c.b16 %v64, %v63
  %v78 = vpack.c.b16 %v66, %v65
  %v79 = vpack.c.b16 %v68, %v67
  %v80 = vpack.c.b16 %v70, %v69
  %v81 = vpack.c.b16 %v72, %v71
  %v82 = vpack.c.b16 %v74, %v73
  %v91 = vunpack.c.l.b16 %v31
  %v92 = vunpack.c.l.b16 %v32
  %v93 = vunpack.c.l.b16 %v33
  %v94 = vunpack.c.l.b16 %v34
  %v95 = vunpack.c.l.b16 %v35
  %v96 = vunpack.c.l.b16 %v36
  %v97 = vunpack.c.l.b16 %v37
  %v98 = vunpack.c.l.b16 %v38
  %v99 = vpack.c.b16 %v92, %v91
  %v100 = vpack.c.b16 %v94, %v93
  %v101 = vpack.c.b16 %v96, %v95
  %v102 = vpack.c.b16 %v98, %v97
  %vm107 = vcmask 523264
  %v109 = vsel %vm107, %v75, 0
  %v112 = vsel %vm107, %v76, 0
  %v115 = vsel %vm107, %v77, 0
  %v118 = vsel %vm107, %v78, 0
  %v121 = vsel %vm107, %v79, 0
  %v124 = vsel %vm107, %v80, 0
  %v127 = vsel %vm107, %v81, 0
  %v130 = vsel %vm107, %v82, 0
  %132 = vmatpush.bf16.msra.mxu0 0
  %133 = vmatpush.bf16.msra.mxu0 0
  %134 = vmatpush.bf16.msra.mxu0 0
  %135 = vmatpush.bf16.msra.mxu0 0
  %136 = vmatpush.bf16.msra.mxu0 %v102
  %137 = vmatpush.bf16.msra.mxu0 %v101
  %138 = vmatpush.bf16.msra.mxu0 %v100
  %139 = vmatpush.bf16.msra.mxu0 %v99
  %140 = vmatmul.bf16.gmra.mxu0 %v109
  %v141 = vpop.f32.mrf.mxu0
  %v142 = vadd.f32 %v41, %v141
  %v143 = vpop.f32.mrf.mxu0
  %v144 = vadd.f32 %v41, %v143
  %145 = vmatmul.bf16.gmra.mxu0 %v112
  %v146 = vpop.f32.mrf.mxu0
  %v147 = vadd.f32 %v41, %v146
  %v148 = vpop.f32.mrf.mxu0
  %v149 = vadd.f32 %v41, %v148
  %150 = vmatmul.bf16.gmra.mxu0 %v115
  %v151 = vpop.f32.mrf.mxu0
  %v152 = vadd.f32 %v41, %v151
  %v153 = vpop.f32.mrf.mxu0
  %v154 = vadd.f32 %v41, %v153
  %155 = vmatmul.bf16.gmra.mxu0 %v118
  %v156 = vpop.f32.mrf.mxu0
  %v157 = vadd.f32 %v41, %v156
  %v158 = vpop.f32.mrf.mxu0
  %v159 = vadd.f32 %v41, %v158
  %160 = vmatmul.bf16.gmra.mxu0 %v121
  %v161 = vpop.f32.mrf.mxu0
  %v162 = vadd.f32 %v41, %v161
  %v163 = vpop.f32.mrf.mxu0
  %v164 = vadd.f32 %v41, %v163
  %165 = vmatmul.bf16.gmra.mxu0 %v124
  %v166 = vpop.f32.mrf.mxu0
  %v167 = vadd.f32 %v41, %v166
  %v168 = vpop.f32.mrf.mxu0
  %v169 = vadd.f32 %v41, %v168
  %170 = vmatmul.bf16.gmra.mxu0 %v127
  %v171 = vpop.f32.mrf.mxu0
  %v172 = vadd.f32 %v41, %v171
  %v173 = vpop.f32.mrf.mxu0
  %v174 = vadd.f32 %v41, %v173
  %175 = vmatmul.bf16.gmra.mxu0 %v130
  %v176 = vpop.f32.mrf.mxu0
  %v177 = vadd.f32 %v41, %v176
  %v178 = vpop.f32.mrf.mxu0
  %v179 = vadd.f32 %v41, %v178
  %180 = vdwg.mxu0
  %v181 = vmax.f32 %v142, 0.0
  %v182 = vmax.f32 %v144, 0.0
  %v183 = vmax.f32 %v147, 0.0
  %v184 = vmax.f32 %v149, 0.0
  %v185 = vmax.f32 %v152, 0.0
  %v186 = vmax.f32 %v154, 0.0
  %v187 = vmax.f32 %v157, 0.0
  %v188 = vmax.f32 %v159, 0.0
  %v189 = vmax.f32 %v162, 0.0
  %v190 = vmax.f32 %v164, 0.0
  %v191 = vmax.f32 %v167, 0.0
  %v192 = vmax.f32 %v169, 0.0
  %v193 = vmax.f32 %v172, 0.0
  %v194 = vmax.f32 %v174, 0.0
  %v195 = vmax.f32 %v177, 0.0
  %v196 = vmax.f32 %v179, 0.0
  %197 = vst [vmem:[%s3] sm:$0xff] %v181
  %198 = vst [vmem:[%s3 + $0x8] sm:$0xff] %v182
  %199 = vst [vmem:[%s3 + $0x10] sm:$0xff] %v183
  %200 = vst [vmem:[%s3 + $0x18] sm:$0xff] %v184
  %201 = vst [vmem:[%s3 + $0x20] sm:$0xff] %v185
  %202 = vst [vmem:[%s3 + $0x28] sm:$0xff] %v186
  %203 = vst [vmem:[%s3 + $0x30] sm:$0xff] %v187
  %204 = vst [vmem:[%s3 + $0x38] sm:$0xff] %v188
  %205 = vst [vmem:[%s3 + $0x40] sm:$0xff] %v189
  %206 = vst [vmem:[%s3 + $0x48] sm:$0xff] %v190
  %207 = vst [vmem:[%s3 + $0x50] sm:$0xff] %v191
  %208 = vst [vmem:[%s3 + $0x58] sm:$0xff] %v192
  %209 = vst [vmem:[%s3 + $0x60] sm:$0xff] %v193
  %210 = vst [vmem:[%s3 + $0x68] sm:$0xff] %v194
  %211 = vst [vmem:[%s3 + $0x70] sm:$0xff] %v195
  %212 = vst [vmem:[%s3 + $0x78] sm:$0xff] %v196
  // Predicated region
  $region14: #{decoder_block_forward.17} parent=0 // pred_check
    _
  $region15: #{decoder_block_forward.17} parent=0 // pred_check_branch
    %214 = sbr.rel (0) target = $region17
  $region16: #{decoder_block_forward.17} parent=0 // pred_region
    _
  $region17: #{decoder_block_forward.17} parent=0 // pred_fallthru
    _
  // Predicated region
  $region18: #{decoder_block_forward.17} parent=0 // pred_check
    _
  $region19: #{decoder_block_forward.17} parent=0 // pred_check_branch
    %216 = sbr.rel (0) target = $region21
  $region20: #{decoder_block_forward.17} parent=0 // pred_region
    _
  $region21: #{decoder_block_forward.17} parent=0 // pred_fallthru
    _

// kernel: decoder_block_forward.13
$region0: #{decoder_block_forward.13}
  #allocation0 [shape = 'u32[]', space=smem, size = 0x4, offset = 0x4, fixed_abs, tag = 'smem constant byte address 0x4 - core index']
  #allocation1 [shape = 'u32[72,128]{1,0:T(1,128)}', space=vmem, size = 0x9000, scoped, tag = 'internal scratch']
  %s0 = inlined_call_operand.vmem [shape: bf16[128,32], index: 0, kind: input, shape index: {}]
  %s1 = inlined_call_operand.vmem [shape: bf16[32,128], index: 1, kind: input, shape index: {}]
  %s2 = inlined_call_operand.vmem [shape: f32[1,128], index: 2, kind: input, shape index: {}]
  %s3 = inlined_call_operand.vmem [shape: f32[128,128], index: 3, kind: output, shape index: {}]
  %s4 = sld [smem:[#allocation0]]
  $region22: #{decoder_block_forward.13} parent=0
    _
  %s6 = ssub.s32 1, %s4
  %s7 = scalar_select 0, %s6, %s4
  // Predicated region
  $region2: #{decoder_block_forward.13} parent=0 // pred_check
    _
  $region3: #{decoder_block_forward.13} parent=0 // pred_check_branch
    %9 = sbr.rel (0) target = $region5
  $region4: #{decoder_block_forward.13} parent=0 // pred_region
    _
  $region5: #{decoder_block_forward.13} parent=0 // pred_fallthru
    _
  // Predicated region
  $region6: #{decoder_block_forward.13} parent=0 // pred_check
    _
  $region7: #{decoder_block_forward.13} parent=0 // pred_check_branch
    %11 = sbr.rel (0) target = $region9
  $region8: #{decoder_block_forward.13} parent=0 // pred_region
    _
  $region9: #{decoder_block_forward.13} parent=0 // pred_fallthru
    _
  // Predicated region
  $region10: #{decoder_block_forward.13} parent=0 // pred_check
    _
  $region11: #{decoder_block_forward.13} parent=0 // pred_check_branch
    %13 = sbr.rel (0) target = $region13
  $region12: #{decoder_block_forward.13} parent=0 // pred_region
    _
  $region13: #{decoder_block_forward.13} parent=0 // pred_fallthru
    _
  %v15 = vld [vmem:[%s0] sm:$0xf]
  %v16 = vld [vmem:[%s0 + $0x4] sm:$0xf]
  %v17 = vld [vmem:[%s0 + $0x8] sm:$0xf]
  %v18 = vld [vmem:[%s0 + $0xc] sm:$0xf]
  %v19 = vld [vmem:[%s0 + $0x10] sm:$0xf]
  %v20 = vld [vmem:[%s0 + $0x14] sm:$0xf]
  %v21 = vld [vmem:[%s0 + $0x18] sm:$0xf]
  %v22 = vld [vmem:[%s0 + $0x1c] sm:$0xf]
  %v23 = vld [vmem:[%s0 + $0x20] sm:$0xf]
  %v24 = vld [vmem:[%s0 + $0x24] sm:$0xf]
  %v25 = vld [vmem:[%s0 + $0x28] sm:$0xf]
  %v26 = vld [vmem:[%s0 + $0x2c] sm:$0xf]
  %v27 = vld [vmem:[%s0 + $0x30] sm:$0xf]
  %v28 = vld [vmem:[%s0 + $0x34] sm:$0xf]
  %v29 = vld [vmem:[%s0 + $0x38] sm:$0xf]
  %v30 = vld [vmem:[%s0 + $0x3c] sm:$0xf]
  %v31 = vld [vmem:[%s1] sm:$0xf]
  %v32 = vld [vmem:[%s1 + $0x4] sm:$0xf]
  %v33 = vld [vmem:[%s1 + $0x8] sm:$0xf]
  %v34 = vld [vmem:[%s1 + $0xc] sm:$0xf]
  %v35 = vld [vmem:[%s2] sm:$0x1]
  %v37 = vperm.slane %v35, 0
  %v55 = vunpack.c.l.b16 %v15
  %v56 = vunpack.c.l.b16 %v16
  %v57 = vunpack.c.l.b16 %v17
  %v58 = vunpack.c.l.b16 %v18
  %v59 = vunpack.c.l.b16 %v19
  %v60 = vunpack.c.l.b16 %v20
  %v61 = vunpack.c.l.b16 %v21
  %v62 = vunpack.c.l.b16 %v22
  %v63 = vunpack.c.l.b16 %v23
  %v64 = vunpack.c.l.b16 %v24
  %v65 = vunpack.c.l.b16 %v25
  %v66 = vunpack.c.l.b16 %v26
  %v67 = vunpack.c.l.b16 %v27
  %v68 = vunpack.c.l.b16 %v28
  %v69 = vunpack.c.l.b16 %v29
  %v70 = vunpack.c.l.b16 %v30
  %v71 = vpack.c.b16 %v56, %v55
  %v72 = vpack.c.b16 %v58, %v57
  %v73 = vpack.c.b16 %v60, %v59
  %v74 = vpack.c.b16 %v62, %v61
  %v75 = vpack.c.b16 %v64, %v63
  %v76 = vpack.c.b16 %v66, %v65
  %v77 = vpack.c.b16 %v68, %v67
  %v78 = vpack.c.b16 %v70, %v69
  %v83 = vunpack.c.l.b16 %v31
  %v84 = vunpack.c.l.b16 %v32
  %v85 = vunpack.c.l.b16 %v33
  %v86 = vunpack.c.l.b16 %v34
  %v87 = vpack.c.b16 %v84, %v83
  %v88 = vpack.c.b16 %v86, %v85
  %vm91 = vcmask 261120
  %v93 = vsel %vm91, %v71, 0
  %v96 = vsel %vm91, %v72, 0
  %v99 = vsel %vm91, %v73, 0
  %v102 = vsel %vm91, %v74, 0
  %v105 = vsel %vm91, %v75, 0
  %v108 = vsel %vm91, %v76, 0
  %v111 = vsel %vm91, %v77, 0
  %v114 = vsel %vm91, %v78, 0
  %116 = vmatpush.bf16.msra.mxu0 0
  %117 = vmatpush.bf16.msra.mxu0 0
  %118 = vmatpush.bf16.msra.mxu0 0
  %119 = vmatpush.bf16.msra.mxu0 0
  %120 = vmatpush.bf16.msra.mxu0 0
  %121 = vmatpush.bf16.msra.mxu0 0
  %122 = vmatpush.bf16.msra.mxu0 %v88
  %123 = vmatpush.bf16.msra.mxu0 %v87
  %124 = vmatmul.bf16.gmra.mxu0 %v93
  %v125 = vpop.f32.mrf.mxu0
  %v126 = vadd.f32 %v37, %v125
  %v127 = vpop.f32.mrf.mxu0
  %v128 = vadd.f32 %v37, %v127
  %129 = vmatmul.bf16.gmra.mxu0 %v96
  %v130 = vpop.f32.mrf.mxu0
  %v131 = vadd.f32 %v37, %v130
  %v132 = vpop.f32.mrf.mxu0
  %v133 = vadd.f32 %v37, %v132
  %134 = vmatmul.bf16.gmra.mxu0 %v99
  %v135 = vpop.f32.mrf.mxu0
  %v136 = vadd.f32 %v37, %v135
  %v137 = vpop.f32.mrf.mxu0
  %v138 = vadd.f32 %v37, %v137
  %139 = vmatmul.bf16.gmra.mxu0 %v102
  %v140 = vpop.f32.mrf.mxu0
  %v141 = vadd.f32 %v37, %v140
  %v142 = vpop.f32.mrf.mxu0
  %v143 = vadd.f32 %v37, %v142
  %144 = vmatmul.bf16.gmra.mxu0 %v105
  %v145 = vpop.f32.mrf.mxu0
  %v146 = vadd.f32 %v37, %v145
  %v147 = vpop.f32.mrf.mxu0
  %v148 = vadd.f32 %v37, %v147
  %149 = vmatmul.bf16.gmra.mxu0 %v108
  %v150 = vpop.f32.mrf.mxu0
  %v151 = vadd.f32 %v37, %v150
  %v152 = vpop.f32.mrf.mxu0
  %v153 = vadd.f32 %v37, %v152
  %154 = vmatmul.bf16.gmra.mxu0 %v111
  %v155 = vpop.f32.mrf.mxu0
  %v156 = vadd.f32 %v37, %v155
  %v157 = vpop.f32.mrf.mxu0
  %v158 = vadd.f32 %v37, %v157
  %159 = vmatmul.bf16.gmra.mxu0 %v114
  %v160 = vpop.f32.mrf.mxu0
  %v161 = vadd.f32 %v37, %v160
  %v162 = vpop.f32.mrf.mxu0
  %v163 = vadd.f32 %v37, %v162
  %164 = vdwg.mxu0
  %v165 = vmax.f32 %v126, 0.0
  %v166 = vmax.f32 %v128, 0.0
  %v167 = vmax.f32 %v131, 0.0
  %v168 = vmax.f32 %v133, 0.0
  %v169 = vmax.f32 %v136, 0.0
  %v170 = vmax.f32 %v138, 0.0
  %v171 = vmax.f32 %v141, 0.0
  %v172 = vmax.f32 %v143, 0.0
  %v173 = vmax.f32 %v146, 0.0
  %v174 = vmax.f32 %v148, 0.0
  %v175 = vmax.f32 %v151, 0.0
  %v176 = vmax.f32 %v153, 0.0
  %v177 = vmax.f32 %v156, 0.0
  %v178 = vmax.f32 %v158, 0.0
  %v179 = vmax.f32 %v161, 0.0
  %v180 = vmax.f32 %v163, 0.0
  %181 = vst [vmem:[%s3] sm:$0xff] %v165
  %182 = vst [vmem:[%s3 + $0x8] sm:$0xff] %v166
  %183 = vst [vmem:[%s3 + $0x10] sm:$0xff] %v167
  %184 = vst [vmem:[%s3 + $0x18] sm:$0xff] %v168
  %185 = vst [vmem:[%s3 + $0x20] sm:$0xff] %v169
  %186 = vst [vmem:[%s3 + $0x28] sm:$0xff] %v170
  %187 = vst [vmem:[%s3 + $0x30] sm:$0xff] %v171
  %188 = vst [vmem:[%s3 + $0x38] sm:$0xff] %v172
  %189 = vst [vmem:[%s3 + $0x40] sm:$0xff] %v173
  %190 = vst [vmem:[%s3 + $0x48] sm:$0xff] %v174
  %191 = vst [vmem:[%s3 + $0x50] sm:$0xff] %v175
  %192 = vst [vmem:[%s3 + $0x58] sm:$0xff] %v176
  %193 = vst [vmem:[%s3 + $0x60] sm:$0xff] %v177
  %194 = vst [vmem:[%s3 + $0x68] sm:$0xff] %v178
  %195 = vst [vmem:[%s3 + $0x70] sm:$0xff] %v179
  %196 = vst [vmem:[%s3 + $0x78] sm:$0xff] %v180
  // Predicated region
  $region14: #{decoder_block_forward.13} parent=0 // pred_check
    _
  $region15: #{decoder_block_forward.13} parent=0 // pred_check_branch
    %198 = sbr.rel (0) target = $region17
  $region16: #{decoder_block_forward.13} parent=0 // pred_region
    _
  $region17: #{decoder_block_forward.13} parent=0 // pred_fallthru
    _
  // Predicated region
  $region18: #{decoder_block_forward.13} parent=0 // pred_check
    _
  $region19: #{decoder_block_forward.13} parent=0 // pred_check_branch
    %200 = sbr.rel (0) target = $region21
  $region20: #{decoder_block_forward.13} parent=0 // pred_region
    _
  $region21: #{decoder_block_forward.13} parent=0 // pred_fallthru
    _

// kernel: decoder_block_forward.11
$region0: #{decoder_block_forward.11}
  #allocation0 [shape = 'u32[]', space=smem, size = 0x4, offset = 0x4, fixed_abs, tag = 'smem constant byte address 0x4 - core index']
  #allocation1 [shape = 'u32[72,128]{1,0:T(1,128)}', space=vmem, size = 0x9000, scoped, tag = 'internal scratch']
  %s0 = inlined_call_operand.vmem [shape: bf16[128,16], index: 0, kind: input, shape index: {}]
  %s1 = inlined_call_operand.vmem [shape: bf16[16,128], index: 1, kind: input, shape index: {}]
  %s2 = inlined_call_operand.vmem [shape: f32[1,128], index: 2, kind: input, shape index: {}]
  %s3 = inlined_call_operand.vmem [shape: f32[128,128], index: 3, kind: output, shape index: {}]
  %s4 = sld [smem:[#allocation0]]
  $region22: #{decoder_block_forward.11} parent=0
    _
  %s6 = ssub.s32 1, %s4
  %s7 = scalar_select 0, %s6, %s4
  // Predicated region
  $region2: #{decoder_block_forward.11} parent=0 // pred_check
    _
  $region3: #{decoder_block_forward.11} parent=0 // pred_check_branch
    %9 = sbr.rel (0) target = $region5
  $region4: #{decoder_block_forward.11} parent=0 // pred_region
    _
  $region5: #{decoder_block_forward.11} parent=0 // pred_fallthru
    _
  // Predicated region
  $region6: #{decoder_block_forward.11} parent=0 // pred_check
    _
  $region7: #{decoder_block_forward.11} parent=0 // pred_check_branch
    %11 = sbr.rel (0) target = $region9
  $region8: #{decoder_block_forward.11} parent=0 // pred_region
    _
  $region9: #{decoder_block_forward.11} parent=0 // pred_fallthru
    _
  // Predicated region
  $region10: #{decoder_block_forward.11} parent=0 // pred_check
    _
  $region11: #{decoder_block_forward.11} parent=0 // pred_check_branch
    %13 = sbr.rel (0) target = $region13
  $region12: #{decoder_block_forward.11} parent=0 // pred_region
    _
  $region13: #{decoder_block_forward.11} parent=0 // pred_fallthru
    _
  %v15 = vld [vmem:[%s0] sm:$0xf]
  %v16 = vld [vmem:[%s0 + $0x4] sm:$0xf]
  %v17 = vld [vmem:[%s0 + $0x8] sm:$0xf]
  %v18 = vld [vmem:[%s0 + $0xc] sm:$0xf]
  %v19 = vld [vmem:[%s0 + $0x10] sm:$0xf]
  %v20 = vld [vmem:[%s0 + $0x14] sm:$0xf]
  %v21 = vld [vmem:[%s0 + $0x18] sm:$0xf]
  %v22 = vld [vmem:[%s0 + $0x1c] sm:$0xf]
  %v23 = vld [vmem:[%s0 + $0x20] sm:$0xf]
  %v24 = vld [vmem:[%s0 + $0x24] sm:$0xf]
  %v25 = vld [vmem:[%s0 + $0x28] sm:$0xf]
  %v26 = vld [vmem:[%s0 + $0x2c] sm:$0xf]
  %v27 = vld [vmem:[%s0 + $0x30] sm:$0xf]
  %v28 = vld [vmem:[%s0 + $0x34] sm:$0xf]
  %v29 = vld [vmem:[%s0 + $0x38] sm:$0xf]
  %v30 = vld [vmem:[%s0 + $0x3c] sm:$0xf]
  %v31 = vld [vmem:[%s1] sm:$0xf]
  %v32 = vld [vmem:[%s1 + $0x4] sm:$0xf]
  %v33 = vld [vmem:[%s2] sm:$0x1]
  %v35 = vperm.slane %v33, 0
  %v53 = vunpack.c.l.b16 %v15
  %v54 = vunpack.c.l.b16 %v16
  %v55 = vunpack.c.l.b16 %v17
  %v56 = vunpack.c.l.b16 %v18
  %v57 = vunpack.c.l.b16 %v19
  %v58 = vunpack.c.l.b16 %v20
  %v59 = vunpack.c.l.b16 %v21
  %v60 = vunpack.c.l.b16 %v22
  %v61 = vunpack.c.l.b16 %v23
  %v62 = vunpack.c.l.b16 %v24
  %v63 = vunpack.c.l.b16 %v25
  %v64 = vunpack.c.l.b16 %v26
  %v65 = vunpack.c.l.b16 %v27
  %v66 = vunpack.c.l.b16 %v28
  %v67 = vunpack.c.l.b16 %v29
  %v68 = vunpack.c.l.b16 %v30
  %v69 = vpack.c.b16 %v54, %v53
  %v70 = vpack.c.b16 %v56, %v55
  %v71 = vpack.c.b16 %v58, %v57
  %v72 = vpack.c.b16 %v60, %v59
  %v73 = vpack.c.b16 %v62, %v61
  %v74 = vpack.c.b16 %v64, %v63
  %v75 = vpack.c.b16 %v66, %v65
  %v76 = vpack.c.b16 %v68, %v67
  %v79 = vunpack.c.l.b16 %v31
  %v80 = vunpack.c.l.b16 %v32
  %v81 = vpack.c.b16 %v80, %v79
  %vm83 = vcmask 130048
  %v85 = vsel %vm83, %v69, 0
  %v88 = vsel %vm83, %v70, 0
  %v91 = vsel %vm83, %v71, 0
  %v94 = vsel %vm83, %v72, 0
  %v97 = vsel %vm83, %v73, 0
  %v100 = vsel %vm83, %v74, 0
  %v103 = vsel %vm83, %v75, 0
  %v106 = vsel %vm83, %v76, 0
  %108 = vmatpush.bf16.msra.mxu0 0
  %109 = vmatpush.bf16.msra.mxu0 0
  %110 = vmatpush.bf16.msra.mxu0 0
  %111 = vmatpush.bf16.msra.mxu0 0
  %112 = vmatpush.bf16.msra.mxu0 0
  %113 = vmatpush.bf16.msra.mxu0 0
  %114 = vmatpush.bf16.msra.mxu0 0
  %115 = vmatpush.bf16.msra.mxu0 %v81
  %116 = vmatmul.bf16.gmra.mxu0 %v85
  %v117 = vpop.f32.mrf.mxu0
  %v118 = vadd.f32 %v35, %v117
  %v119 = vpop.f32.mrf.mxu0
  %v120 = vadd.f32 %v35, %v119
  %121 = vmatmul.bf16.gmra.mxu0 %v88
  %v122 = vpop.f32.mrf.mxu0
  %v123 = vadd.f32 %v35, %v122
  %v124 = vpop.f32.mrf.mxu0
  %v125 = vadd.f32 %v35, %v124
  %126 = vmatmul.bf16.gmra.mxu0 %v91
  %v127 = vpop.f32.mrf.mxu0
  %v128 = vadd.f32 %v35, %v127
  %v129 = vpop.f32.mrf.mxu0
  %v130 = vadd.f32 %v35, %v129
  %131 = vmatmul.bf16.gmra.mxu0 %v94
  %v132 = vpop.f32.mrf.mxu0
  %v133 = vadd.f32 %v35, %v132
  %v134 = vpop.f32.mrf.mxu0
  %v135 = vadd.f32 %v35, %v134
  %136 = vmatmul.bf16.gmra.mxu0 %v97
  %v137 = vpop.f32.mrf.mxu0
  %v138 = vadd.f32 %v35, %v137
  %v139 = vpop.f32.mrf.mxu0
  %v140 = vadd.f32 %v35, %v139
  %141 = vmatmul.bf16.gmra.mxu0 %v100
  %v142 = vpop.f32.mrf.mxu0
  %v143 = vadd.f32 %v35, %v142
  %v144 = vpop.f32.mrf.mxu0
  %v145 = vadd.f32 %v35, %v144
  %146 = vmatmul.bf16.gmra.mxu0 %v103
  %v147 = vpop.f32.mrf.mxu0
  %v148 = vadd.f32 %v35, %v147
  %v149 = vpop.f32.mrf.mxu0
  %v150 = vadd.f32 %v35, %v149
  %151 = vmatmul.bf16.gmra.mxu0 %v106
  %v152 = vpop.f32.mrf.mxu0
  %v153 = vadd.f32 %v35, %v152
  %v154 = vpop.f32.mrf.mxu0
  %v155 = vadd.f32 %v35, %v154
  %156 = vdwg.mxu0
  %v157 = vmax.f32 %v118, 0.0
  %v158 = vmax.f32 %v120, 0.0
  %v159 = vmax.f32 %v123, 0.0
  %v160 = vmax.f32 %v125, 0.0
  %v161 = vmax.f32 %v128, 0.0
  %v162 = vmax.f32 %v130, 0.0
  %v163 = vmax.f32 %v133, 0.0
  %v164 = vmax.f32 %v135, 0.0
  %v165 = vmax.f32 %v138, 0.0
  %v166 = vmax.f32 %v140, 0.0
  %v167 = vmax.f32 %v143, 0.0
  %v168 = vmax.f32 %v145, 0.0
  %v169 = vmax.f32 %v148, 0.0
  %v170 = vmax.f32 %v150, 0.0
  %v171 = vmax.f32 %v153, 0.0
  %v172 = vmax.f32 %v155, 0.0
  %173 = vst [vmem:[%s3] sm:$0xff] %v157
  %174 = vst [vmem:[%s3 + $0x8] sm:$0xff] %v158
  %175 = vst [vmem:[%s3 + $0x10] sm:$0xff] %v159
  %176 = vst [vmem:[%s3 + $0x18] sm:$0xff] %v160
  %177 = vst [vmem:[%s3 + $0x20] sm:$0xff] %v161
  %178 = vst [vmem:[%s3 + $0x28] sm:$0xff] %v162
  %179 = vst [vmem:[%s3 + $0x30] sm:$0xff] %v163
  %180 = vst [vmem:[%s3 + $0x38] sm:$0xff] %v164
  %181 = vst [vmem:[%s3 + $0x40] sm:$0xff] %v165
  %182 = vst [vmem:[%s3 + $0x48] sm:$0xff] %v166
  %183 = vst [vmem:[%s3 + $0x50] sm:$0xff] %v167
  %184 = vst [vmem:[%s3 + $0x58] sm:$0xff] %v168
  %185 = vst [vmem:[%s3 + $0x60] sm:$0xff] %v169
  %186 = vst [vmem:[%s3 + $0x68] sm:$0xff] %v170
  %187 = vst [vmem:[%s3 + $0x70] sm:$0xff] %v171
  %188 = vst [vmem:[%s3 + $0x78] sm:$0xff] %v172
  // Predicated region
  $region14: #{decoder_block_forward.11} parent=0 // pred_check
    _
  $region15: #{decoder_block_forward.11} parent=0 // pred_check_branch
    %190 = sbr.rel (0) target = $region17
  $region16: #{decoder_block_forward.11} parent=0 // pred_region
    _
  $region17: #{decoder_block_forward.11} parent=0 // pred_fallthru
    _
  // Predicated region
  $region18: #{decoder_block_forward.11} parent=0 // pred_check
    _
  $region19: #{decoder_block_forward.11} parent=0 // pred_check_branch
    %192 = sbr.rel (0) target = $region21
  $region20: #{decoder_block_forward.11} parent=0 // pred_region
    _
  $region21: #{decoder_block_forward.11} parent=0 // pred_fallthru
    _

</llo_original>
